<compile_context>
chip_gen: v7x
topology: tpu7x:2x2x1
jax: 0.10.0
libtpu: 0.0.40
codegen_flags: <defaults>
</compile_context>

<pallas_src>
import functools

import numpy as np
import jax
import jax.numpy as jnp
from jax.experimental import pallas as pl
from jax.experimental.pallas import tpu as pltpu


# ----------------------------------------------------------------------------
# sincos embedding utilities (numpy glue, standard MAE/CoTracker definitions)
# ----------------------------------------------------------------------------
def get_1d_sincos_pos_embed_from_grid(embed_dim, pos):
    omega = np.arange(embed_dim // 2, dtype=np.float64) / (embed_dim / 2.0)
    omega = 1.0 / 10000 ** omega
    pos = np.asarray(pos, dtype=np.float64).reshape(-1)
    out = np.einsum("m,d->md", pos, omega)
    return np.concatenate([np.sin(out), np.cos(out)], axis=1)  # [M, embed_dim]


def get_2d_sincos_pos_embed(embed_dim, grid_size):
    gh, gw = grid_size
    grid_h = np.arange(gh, dtype=np.float32)
    grid_w = np.arange(gw, dtype=np.float32)
    grid = np.meshgrid(grid_w, grid_h)  # w goes first
    grid = np.stack(grid, axis=0).reshape([2, 1, gh, gw])
    emb_h = get_1d_sincos_pos_embed_from_grid(embed_dim // 2, grid[0])
    emb_w = get_1d_sincos_pos_embed_from_grid(embed_dim // 2, grid[1])
    return np.concatenate([emb_h, emb_w], axis=1)  # [gh*gw, embed_dim]


def get_2d_embedding(xy, C, cat_coords=True):
    x = xy[..., 0:1]
    y = xy[..., 1:2]
    div_term = (jnp.arange(0, C, 2, dtype=jnp.float32) * (1000.0 / C)).reshape(1, 1, C // 2)
    pe_x = jnp.stack([jnp.sin(x * div_term), jnp.cos(x * div_term)], axis=-1)
    pe_x = pe_x.reshape(*xy.shape[:-1], C)
    pe_y = jnp.stack([jnp.sin(y * div_term), jnp.cos(y * div_term)], axis=-1)
    pe_y = pe_y.reshape(*xy.shape[:-1], C)
    pe = jnp.concatenate([pe_x, pe_y], axis=-1)
    if cat_coords:
        pe = jnp.concatenate([xy, pe], axis=-1)
    return pe


# ----------------------------------------------------------------------------
# tile pickers (trace-time helpers)
# ----------------------------------------------------------------------------
def _pick_row_tile(m, cap=512):
    """Largest multiple-of-8 divisor of m that is <= cap and gives grid >= 2."""
    best = m
    t = 8
    limit = min(m // 2, cap)
    while t <= limit:
        if m % t == 0:
            best = t
        t += 8
    return best


def _pick_lane_tile(n):
    """Lane-dim tile: must be a multiple of 128 or the full dim n."""
    if n > 128 and n % 128 == 0:
        return 128
    return n


# ----------------------------------------------------------------------------
# Pallas kernel 1: single-image bilinear sampling via one-hot MXU matmul
#   (sample_pos_embed / feat_init sampling; C is 128 / 512-padded so the output
#    is lane-dense; the image operand arrives pre-cast in bf16, accumulate f32)
# ----------------------------------------------------------------------------
def _bilinear_sample_mxu_kernel(coords_ref, img_ref, out_ref, *, H, W, mode):
    coords = coords_ref[...]                      # [tn, 2] pixel (x, y)
    img = img_ref[...]                            # [HW, C] (bf16, pre-cast by caller)
    n = coords.shape[0]
    hw = img.shape[0]
    x = coords[:, 0:1]
    y = coords[:, 1:2]
    x0 = jnp.floor(x)
    y0 = jnp.floor(y)
    fx = x - x0
    fy = y - y0
    # single broadcast row, not an [N, HW] iota
    hw_ids = jax.lax.broadcasted_iota(jnp.int32, (1, hw), 1)
    wmat = jnp.zeros((n, hw), jnp.float32)
    for dy in (0, 1):
        for dx in (0, 1):
            xi = x0 + dx
            yi = y0 + dy
            w = (fx if dx == 1 else 1.0 - fx) * (fy if dy == 1 else 1.0 - fy)
            if mode == "zeros":                   # grid_sample padding_mode='zeros'
                valid = (xi >= 0) & (xi <= W - 1) & (yi >= 0) & (yi <= H - 1)
                w = jnp.where(valid, w, 0.0)
            # 'border' mode (bilinear_sample2d) clamps indices, keeps weights.
            xi = jnp.clip(xi, 0.0, float(W - 1))
            yi = jnp.clip(yi, 0.0, float(H - 1))
            flat = (yi * W + xi).astype(jnp.int32)        # [tn, 1]
            wmat = wmat + jnp.where(hw_ids == flat, w, 0.0)
    out_ref[...] = jnp.dot(wmat.astype(img.dtype), img,
                           preferred_element_type=jnp.float32)


def bilinear_sample_mxu(img_flat, coords, H, W, mode="border", tn=None):
    """img_flat: [H*W, C] (row-major h*W+w; bf16 preferred); coords: [N, 2] -> [N, C] f32."""
    HW, C = img_flat.shape
    N = coords.shape[0]
    if tn is None:
        tn = N if N <= 128 else _pick_row_tile(N, cap=128)
    assert N % tn == 0
    kern = functools.partial(_bilinear_sample_mxu_kernel, H=H, W=W, mode=mode)
    return pl.pallas_call(
        kern,
        out_shape=jax.ShapeDtypeStruct((N, C), jnp.float32),
        grid=(N // tn,),
        in_specs=[pl.BlockSpec((tn, 2), lambda i: (i, 0)),
                  pl.BlockSpec((HW, C), lambda i: (0, 0))],
        out_specs=pl.BlockSpec((tn, C), lambda i: (i, 0)),
        compiler_params=pltpu.CompilerParams(dimension_semantics=("parallel",)),
    )(coords.astype(jnp.float32), img_flat)


def _bilinear_sample_ref(img_flat, coords, H, W, mode):
    x = coords[:, 0]
    y = coords[:, 1]
    x0 = jnp.floor(x)
    y0 = jnp.floor(y)
    fx = x - x0
    fy = y - y0
    out = jnp.zeros((coords.shape[0], img_flat.shape[1]), jnp.float32)
    for dy in (0, 1):
        for dx in (0, 1):
            xi = x0 + dx
            yi = y0 + dy
            w = (fx if dx == 1 else 1.0 - fx) * (fy if dy == 1 else 1.0 - fy)
            if mode == "zeros":
                valid = (xi >= 0) & (xi <= W - 1) & (yi >= 0) & (yi <= H - 1)
                w = jnp.where(valid, w, 0.0)
            xi = jnp.clip(xi, 0, W - 1).astype(jnp.int32)
            yi = jnp.clip(yi, 0, H - 1).astype(jnp.int32)
            out = out + w[:, None] * img_flat[yi * W + xi]
    return out


# ----------------------------------------------------------------------------
# Pallas kernel 2: inverse-depth (C == 1) bilinear sampling.
#   * [S, N] layout (lane = tracks -> lane-dense output at real N)
#   * corner adjacency: 2 one-hot compares (f00, f00+W); x+1 values come from a
#     hoisted rolled copy of the map (valid because zeros-mode OOB weights are 0)
#   * gridded over N, parallel semantics (VMEM-bounded / megacore on v7x)
# ----------------------------------------------------------------------------
def _depth_sample_kernel(coords_ref, inv_ref, invr_ref, out_ref, *, H, W):
    coords = coords_ref[...]                      # [S, tn, 2]
    inv = inv_ref[...]                            # [S, HW]
    invr = invr_ref[...]                          # [S, HW] = inv shifted by +1 (flat)
    hw = inv.shape[1]
    x = coords[:, :, 0]                           # [S, tn]
    y = coords[:, :, 1]
    x0 = jnp.floor(x)
    y0 = jnp.floor(y)
    fx = x - x0
    fy = y - y0
    # grid_sample padding_mode='zeros': out-of-bounds corners contribute 0.
    vx0 = (x0 >= 0.0) & (x0 <= W - 1.0)
    vx1 = (x0 + 1.0 >= 0.0) & (x0 + 1.0 <= W - 1.0)
    vy0 = (y0 >= 0.0) & (y0 <= H - 1.0)
    vy1 = (y0 + 1.0 >= 0.0) & (y0 + 1.0 <= H - 1.0)
    w00 = jnp.where(vx0 & vy0, (1.0 - fx) * (1.0 - fy), 0.0)
    w10 = jnp.where(vx1 & vy0, fx * (1.0 - fy), 0.0)
    w01 = jnp.where(vx0 & vy1, (1.0 - fx) * fy, 0.0)
    w11 = jnp.where(vx1 & vy1, fx * fy, 0.0)
    f00 = (y0 * W + x0).astype(jnp.int32)          # [S, tn]
    f01 = f00 + W
    hw_ids = jax.lax.broadcasted_iota(jnp.int32, (1, 1, hw), 2)  # single broadcast row
    m00 = hw_ids == f00[:, :, None]                # [S, tn, HW]
    m01 = hw_ids == f01[:, :, None]
    inv_b = inv[:, None, :]                        # [S, 1, HW]
    invr_b = invr[:, None, :]
    v00 = jnp.sum(jnp.where(m00, inv_b, 0.0), axis=-1)
    v10 = jnp.sum(jnp.where(m00, invr_b, 0.0), axis=-1)   # x+1 corner via rolled map
    v01 = jnp.sum(jnp.where(m01, inv_b, 0.0), axis=-1)
    v11 = jnp.sum(jnp.where(m01, invr_b, 0.0), axis=-1)
    out_ref[...] = w00 * v00 + w10 * v10 + w01 * v01 + w11 * v11


def depth_bilinear_sample(inv_maps, coords_sn, H, W, tn=None):
    """inv_maps: [S, H*W] f32; coords_sn: [S, N, 2] pixel (x, y) -> [S, N] f32."""
    S, HW = inv_maps.shape
    N = coords_sn.shape[1]
    if tn is None:
        tn = _pick_lane_tile(N)
    assert N % tn == 0
    # loop-invariant rolled copy (x+1 flat neighbour); hoisted out of the kernel.
    inv_roll = jnp.roll(inv_maps, -1, axis=-1)
    kern = functools.partial(_depth_sample_kernel, H=H, W=W)
    return pl.pallas_call(
        kern,
        out_shape=jax.ShapeDtypeStruct((S, N), jnp.float32),
        grid=(N // tn,),
        in_specs=[pl.BlockSpec((S, tn, 2), lambda i: (0, i, 0)),
                  pl.BlockSpec((S, HW), lambda i: (0, 0)),
                  pl.BlockSpec((S, HW), lambda i: (0, 0))],
        out_specs=pl.BlockSpec((S, tn), lambda i: (0, i)),
        compiler_params=pltpu.CompilerParams(dimension_semantics=("parallel",)),
    )(coords_sn.astype(jnp.float32), inv_maps.astype(jnp.float32),
      inv_roll.astype(jnp.float32))


def _depth_sample_ref(inv_maps, coords_sn, H, W):
    """Pure-JAX zeros-mode bilinear reference; coords_sn [S,N,2] -> [S,N]."""
    S = inv_maps.shape[0]
    x = coords_sn[..., 0]
    y = coords_sn[..., 1]
    x0 = jnp.floor(x)
    y0 = jnp.floor(y)
    fx = x - x0
    fy = y - y0
    out = jnp.zeros(coords_sn.shape[:2], jnp.float32)
    s_ids = jnp.arange(S)[:, None]
    for dy in (0, 1):
        for dx in (0, 1):
            xi = x0 + dx
            yi = y0 + dy
            w = (fx if dx == 1 else 1.0 - fx) * (fy if dy == 1 else 1.0 - fy)
            valid = (xi >= 0) & (xi <= W - 1) & (yi >= 0) & (yi <= H - 1)
            w = jnp.where(valid, w, 0.0)
            xi = jnp.clip(xi, 0, W - 1).astype(jnp.int32)
            yi = jnp.clip(yi, 0, H - 1).astype(jnp.int32)
            out = out + w * inv_maps[s_ids, yi * W + xi]
    return out


# ----------------------------------------------------------------------------
# Pallas kernel 3 (fused): GroupNorm(1,C) -> Linear(C,C) -> GELU -> +residual,
# with the vis_predictor Linear(C,1) fused in as a VPU-reduce epilogue.
# Residual input is aliased to the feature output (in-place update); the Linear
# weight arrives pre-cast in bf16 (f32 accumulate; elementwise stays f32).
# ----------------------------------------------------------------------------
def _ffeat_update_vis_kernel(delta_ref, feat_ref, gnw_ref, gnb_ref, w_ref, b_ref,
                             vw_ref, vb_ref, out_ref, vis_ref):
    x = delta_ref[...]
    mu = jnp.mean(x, axis=-1, keepdims=True)
    xc = x - mu
    var = jnp.mean(xc * xc, axis=-1, keepdims=True)
    xhat = xc * jax.lax.rsqrt(var + 1e-5)
    y = xhat * gnw_ref[...] + gnb_ref[...]
    # bf16 MXU operands (weight pre-cast outside), f32 accumulate.
    z = jnp.dot(y.astype(w_ref.dtype), w_ref[...],
                preferred_element_type=jnp.float32) + b_ref[...]
    g = jax.nn.gelu(z, approximate=False)         # PyTorch nn.GELU default (exact erf)
    new = g + feat_ref[...]
    out_ref[...] = new
    # vis epilogue: Linear(C, 1) as elementwise mul + lane reduce (no MXU).
    # NOTE: a lane-dense (1, tm) vis block would violate the (8,128)/full-dim
    # BlockSpec rule whenever grid >= 2 and tm < 128; the tensor is tiny, so the
    # narrow (tm, 1) store is kept.
    vis_ref[...] = jnp.sum(new * vw_ref[...], axis=-1, keepdims=True) + vb_ref[...]


def ffeat_update_vis(delta_feats, ffeats, gn_w, gn_b, lin_w_t, lin_b,
                     vis_w_t, vis_b, tm=None):
    """Returns (new_ffeats [M, C], vis [M, 1])."""
    M, C = delta_feats.shape
    if tm is None:
        # grid >= 2 when possible (keeps both v7x TensorCores busy via "parallel"),
        # tiles up to 512 rows at real M (v6e per-step overhead amortization).
        tm = _pick_row_tile(M, cap=512)
    assert M % tm == 0
    return pl.pallas_call(
        _ffeat_update_vis_kernel,
        out_shape=(jax.ShapeDtypeStruct((M, C), jnp.float32),
                   jax.ShapeDtypeStruct((M, 1), jnp.float32)),
        grid=(M // tm,),
        in_specs=[
            pl.BlockSpec((tm, C), lambda i: (i, 0)),
            pl.BlockSpec((tm, C), lambda i: (i, 0)),
            pl.BlockSpec((1, C), lambda i: (0, 0)),
            pl.BlockSpec((1, C), lambda i: (0, 0)),
            pl.BlockSpec((C, C), lambda i: (0, 0)),
            pl.BlockSpec((1, C), lambda i: (0, 0)),
            pl.BlockSpec((1, C), lambda i: (0, 0)),
            pl.BlockSpec((1, 1), lambda i: (0, 0)),
        ],
        out_specs=(pl.BlockSpec((tm, C), lambda i: (i, 0)),
                   pl.BlockSpec((tm, 1), lambda i: (i, 0))),
        input_output_aliases={1: 0},               # residual update in place
        compiler_params=pltpu.CompilerParams(dimension_semantics=("parallel",)),
    )(delta_feats, ffeats, gn_w.reshape(1, C), gn_b.reshape(1, C),
      lin_w_t.astype(jnp.bfloat16), lin_b.reshape(1, C),
      vis_w_t.reshape(1, C), vis_b.reshape(1, 1))


def _ffeat_update_ref(delta, feat, gn_w, gn_b, w_t, b):
    mu = delta.mean(axis=-1, keepdims=True)
    var = ((delta - mu) ** 2).mean(axis=-1, keepdims=True)
    xhat = (delta - mu) / jnp.sqrt(var + 1e-5)
    y = xhat * gn_w + gn_b
    z = y @ w_t + b
    return jax.nn.gelu(z, approximate=False) + feat


# ----------------------------------------------------------------------------
# SceneTracker.forward_iteration core (JAX glue around the Pallas kernels).
# State is kept in track-major [B, N, S, ...] layout across the loop.
# ----------------------------------------------------------------------------
@functools.partial(jax.jit, static_argnames=("iters", "stride"))
def scene_tracker_iteration(fmaps, fdeps, coords_init, deps_pred_init, feat_init,
                            vis_init, track_mask, params, deltas, iters=4, stride=8):
    B, S, C_lat, H8, W8 = fmaps.shape
    N = coords_init.shape[2]
    assert B == 1                                  # module asserts B == 1
    embed_dim = 456 + 4

    # ---- loop-invariant pieces (hoisted) ------------------------------------
    fdeps = jnp.where(fdeps < 0.01, 85.0, fdeps)
    finvs_flat = (1.0 / fdeps).reshape(S, H8 * W8)                 # [S, HW]

    # pos-embed table padded 460 -> 512 lanes and pre-cast to bf16 (MXU operand).
    pe_pad = int(np.ceil(embed_dim / 128.0) * 128)
    pe_np = np.zeros((H8 * W8, pe_pad), np.float32)
    pe_np[:, :embed_dim] = get_2d_sincos_pos_embed(embed_dim, (H8, W8))
    pe_table = jnp.asarray(pe_np, jnp.bfloat16)
    pos_embed = bilinear_sample_mxu(pe_table, coords_init[0, 0], H8, W8, mode="border")
    pos_embed = pos_embed[:, :embed_dim].reshape(B * N, 1, embed_dim)
    times = np.linspace(0, S - 1, S).reshape(S, 1)
    times_embed = jnp.asarray(
        get_1d_sincos_pos_embed_from_grid(embed_dim, times), jnp.float32)[None]  # [1,S,E]

    # TODO(synk): CorrBlock (pyramid correlation) source not provided; zero fill.
    LRR = 4 * (2 * 3 + 1) ** 2
    fcorrs_ = jnp.zeros((B * N, S, LRR), jnp.float32)
    concat = jnp.concatenate([track_mask, vis_init], axis=2)        # [B,S,2N,1]
    concat_ = concat.transpose(0, 2, 1, 3).reshape(B * N, S, 2)

    # ---- track-major state ---------------------------------------------------
    coords = coords_init.transpose(0, 2, 1, 3)                      # [B,N,S,2]
    deps_pred = deps_pred_init.transpose(0, 2, 1, 3)                # [B,N,S,1]
    ffeats_flat = feat_init.transpose(0, 2, 1, 3).reshape(B * N * S, C_lat)

    coord_predictions, dep_predictions = [], []
    vis_flat = None
    x = None
    for it in range(iters):
        deps_pred = jnp.where(deps_pred < 0.01, 0.01, deps_pred)

        # get_dcorrs: bilinear-sample inverse-depth maps at track coords (Pallas,
        # [S, N] lane-major layout; the transposes are tiny [S,N,2]/[S,N] tensors).
        coords_sn = coords[0].transpose(1, 0, 2)                    # [S, N, 2]
        invs_proj = depth_bilinear_sample(finvs_flat, coords_sn, H8, W8)   # [S, N]
        dcorrs_ = invs_proj.T.reshape(B * N, S, 1) - 1.0 / deps_pred.reshape(B * N, S, 1)

        flows_ = (coords - coords[:, :, 0:1]).reshape(B * N, S, 2)
        dep_flows_ = (deps_pred - deps_pred[:, :, 0:1]).reshape(B * N, S, 1)
        flows_cat = get_2d_embedding(flows_, 64, cat_coords=True)
        ffeats_ = ffeats_flat.reshape(B * N, S, C_lat)
        transformer_input = jnp.concatenate(
            [flows_cat, fcorrs_, dep_flows_, dep_flows_, dcorrs_, dcorrs_, ffeats_, concat_],
            axis=2)
        x = transformer_input + pos_embed + times_embed             # [B*N, S, 460]

        # TODO(synk): UpdateFormer transformer not provided; `deltas[it]` stands in
        # for its output so the downstream Pallas kernels are exercised.
        delta = deltas[it]                                          # [B*N, S, 131]
        delta_coords_ = delta[:, :, :2].reshape(B, N, S, 2)
        delta_deps_ = delta[:, :, 2:3].reshape(B, N, S, 1)
        delta_feats_ = delta[:, :, 3:].reshape(B * N * S, C_lat)

        ffeats_flat, vis_flat = ffeat_update_vis(
            delta_feats_, ffeats_flat,
            params["gn_w"], params["gn_b"],
            params["ffeat_w_t"], params["ffeat_b"],
            params["vis_w_t"], params["vis_b"])

        coords = coords + delta_coords_
        coord_predictions.append((coords * stride).transpose(0, 2, 1, 3))
        deps_pred = jnp.where(deps_pred + delta_deps_ < 0.01, 0.01, deps_pred + delta_deps_)
        dep_predictions.append(deps_pred.transpose(0, 2, 1, 3))

    # vis is produced by the fused epilogue of the last ffeat update
    # (matches the original: vis_predictor applied once to the final ffeats).
    vis_e = vis_flat.reshape(B, N, S).transpose(0, 2, 1)            # [B, S, N]

    # NOTE: the original returns feat_init here (discarded by its caller); we
    # return the assembled UpdateFormer input `x` instead so the pos-embed /
    # depth-correlation Pallas path stays live under jit while the transformer
    # is stubbed (see TODO above).
    return coord_predictions, dep_predictions, vis_e, x


# ----------------------------------------------------------------------------
if __name__ == "__main__":
    key = jax.random.PRNGKey(0)
    ks = jax.random.split(key, 12)

    B, S, N = 1, 16, 8
    C_lat, H8, W8 = 128, 16, 16
    iters = 4

    # synthetic inputs (fmaps plays the role of self.fnet output — see TODO above)
    fmaps = jax.random.normal(ks[0], (B, S, C_lat, H8, W8), jnp.float32)
    fdeps = 0.5 + 4.5 * jax.random.uniform(ks[1], (B, S, 1, H8, W8), jnp.float32)
    c0 = 1.0 + (H8 - 3) * jax.random.uniform(ks[2], (B, 1, N, 2), jnp.float32)
    coords_init = jnp.broadcast_to(c0, (B, S, N, 2))
    d0 = 0.5 + 4.5 * jax.random.uniform(ks[3], (B, 1, N, 1), jnp.float32)
    deps_pred_init = jnp.broadcast_to(d0, (B, S, N, 1))
    vis_init = 10.0 * jnp.ones((B, S, N, 1), jnp.float32)
    track_mask = jnp.ones((B, S, N, 1), jnp.float32)
    deltas = 0.1 * jax.random.normal(ks[4], (iters, B * N, S, 3 + C_lat), jnp.float32)

    # deterministic parameters (shapes from SceneTracker.__init__);
    # the ffeat Linear weight is stored pre-cast in bf16 (loop-invariant MXU operand).
    params = dict(
        gn_w=1.0 + 0.1 * jax.random.normal(ks[5], (C_lat,), jnp.float32),
        gn_b=0.1 * jax.random.normal(ks[6], (C_lat,), jnp.float32),
        ffeat_w_t=(0.05 * jax.random.normal(ks[7], (C_lat, C_lat), jnp.float32)
                   ).astype(jnp.bfloat16),                                   # Linear W^T
        ffeat_b=0.05 * jax.random.normal(ks[8], (C_lat,), jnp.float32),
        vis_w_t=0.05 * jax.random.normal(ks[9], (C_lat, 1), jnp.float32),
        vis_b=0.05 * jax.random.normal(ks[10], (1,), jnp.float32),
    )

    # feat_init: bilinear sample of frame-0 feature map at query coords (Pallas);
    # frame-0 map pre-cast to bf16 once.
    fmap0_flat = fmaps[0, 0].reshape(C_lat, H8 * W8).T.astype(jnp.bfloat16)   # [HW, C]
    feat0 = bilinear_sample_mxu(fmap0_flat, coords_init[0, 0], H8, W8, mode="border")
    feat_init = jnp.broadcast_to(feat0[None, None], (B, S, N, C_lat))

    outs = scene_tracker_iteration(fmaps, fdeps, coords_init, deps_pred_init,
                                   feat_init, vis_init, track_mask, params,
                                   deltas, iters=iters)
    jax.block_until_ready(outs)

    # --- correctness spot checks against pure-JAX references ---
    # 1) border-mode feature sampling (bf16 MXU path)
    ref = _bilinear_sample_ref(fmap0_flat.astype(jnp.float32), coords_init[0, 0],
                               H8, W8, mode="border")
    got = bilinear_sample_mxu(fmap0_flat, coords_init[0, 0], H8, W8, mode="border")
    np.testing.assert_allclose(np.asarray(got), np.asarray(ref), rtol=3e-2, atol=3e-2)

    # 2) zeros-mode inverse-depth sampling (f32 VPU path, [S, N] layout)
    finvs_flat = (1.0 / jnp.where(fdeps < 0.01, 85.0, fdeps)).reshape(S, H8 * W8)
    coords_sn = coords_init[0]                                        # [S, N, 2]
    ref = _depth_sample_ref(finvs_flat, coords_sn, H8, W8)
    got = depth_bilinear_sample(finvs_flat, coords_sn, H8, W8)
    np.testing.assert_allclose(np.asarray(got), np.asarray(ref), rtol=1e-4, atol=1e-4)

    # 3) fused GroupNorm -> Linear -> GELU -> +residual with vis epilogue
    dflat = deltas[0][:, :, 3:].reshape(B * N * S, C_lat)
    fflat = feat_init.transpose(0, 2, 1, 3).reshape(B * N * S, C_lat)
    w_f32 = params["ffeat_w_t"].astype(jnp.float32)
    ref_feat = _ffeat_update_ref(dflat, fflat, params["gn_w"], params["gn_b"],
                                 w_f32, params["ffeat_b"])
    ref_vis = ref_feat @ params["vis_w_t"] + params["vis_b"]
    got_feat, got_vis = ffeat_update_vis(dflat, fflat, params["gn_w"], params["gn_b"],
                                         params["ffeat_w_t"], params["ffeat_b"],
                                         params["vis_w_t"], params["vis_b"])
    np.testing.assert_allclose(np.asarray(got_feat), np.asarray(ref_feat), rtol=3e-2, atol=3e-2)
    np.testing.assert_allclose(np.asarray(got_vis), np.asarray(ref_vis), rtol=3e-2, atol=3e-2)

    print("KERNEL_OK")
</pallas_src>

<mosaic_0001>
module attributes {stable_mosaic.version = 11 : i64} {
  func.func @_bilinear_sample_mxu_kernel(%arg0: i32, %arg1: memref<8x2xf32, #tpu.memory_space<vmem>>, %arg2: memref<256x128xbf16, #tpu.memory_space<vmem>>, %arg3: memref<8x128xf32, #tpu.memory_space<vmem>>) attributes {dimension_semantics = [#tpu.dimension_semantics<parallel>], iteration_bounds = array<i64: 1>, scalar_prefetch = 0 : i64, scratch_operands = 0 : i64, tpu.core_type = #tpu.core_type<tc>, window_params = [{transform_indices = @transform_0, window_bounds = array<i64: 8, 2>}, {pipeline_mode = #tpu.pipeline_mode<synchronous>, transform_indices = @transform_1, window_bounds = array<i64: 256, 128>}, {transform_indices = @transform_2, window_bounds = array<i64: 8, 128>}]} {
    %c0 = arith.constant 0 : index
    %c0_0 = arith.constant 0 : index
    %0 = vector.load %arg1[%c0, %c0_0] : memref<8x2xf32, #tpu.memory_space<vmem>>, vector<8x2xf32>
    %c0_1 = arith.constant 0 : index
    %c0_2 = arith.constant 0 : index
    %1 = vector.load %arg2[%c0_1, %c0_2] : memref<256x128xbf16, #tpu.memory_space<vmem>>, vector<256x128xbf16>
    %2 = vector.extract_strided_slice %0 {offsets = [0, 0], sizes = [8, 1], strides = [1, 1]} : vector<8x2xf32> to vector<8x1xf32>
    %3 = vector.extract_strided_slice %0 {offsets = [0, 1], sizes = [8, 1], strides = [1, 1]} : vector<8x2xf32> to vector<8x1xf32>
    %4 = math.floor %2 : vector<8x1xf32>
    %5 = math.floor %3 : vector<8x1xf32>
    %6 = arith.subf %2, %4 : vector<8x1xf32>
    %7 = arith.subf %3, %5 : vector<8x1xf32>
    %8 = tpu.iota {dimensions = array<i32: 1>} : vector<1x256xi32>
    %cst = arith.constant 0.000000e+00 : f32
    %9 = vector.broadcast %cst : f32 to vector<8x256xf32>
    %cst_3 = arith.constant 0.000000e+00 : f32
    %10 = vector.broadcast %cst_3 : f32 to vector<8x1xf32>
    %11 = arith.addf %4, %10 : vector<8x1xf32>
    %cst_4 = arith.constant 0.000000e+00 : f32
    %12 = vector.broadcast %cst_4 : f32 to vector<8x1xf32>
    %13 = arith.addf %5, %12 : vector<8x1xf32>
    %cst_5 = arith.constant 1.000000e+00 : f32
    %14 = vector.broadcast %cst_5 : f32 to vector<8x1xf32>
    %15 = arith.subf %14, %6 : vector<8x1xf32>
    %cst_6 = arith.constant 1.000000e+00 : f32
    %16 = vector.broadcast %cst_6 : f32 to vector<8x1xf32>
    %17 = arith.subf %16, %7 : vector<8x1xf32>
    %18 = arith.mulf %15, %17 : vector<8x1xf32>
    %cst_7 = arith.constant 0.000000e+00 : f32
    %cst_8 = arith.constant 1.500000e+01 : f32
    %19 = vector.broadcast %cst_7 : f32 to vector<8x1xf32>
    %20 = arith.maximumf %19, %11 : vector<8x1xf32>
    %21 = vector.broadcast %cst_8 : f32 to vector<8x1xf32>
    %22 = arith.minimumf %21, %20 : vector<8x1xf32>
    %cst_9 = arith.constant 0.000000e+00 : f32
    %cst_10 = arith.constant 1.500000e+01 : f32
    %23 = vector.broadcast %cst_9 : f32 to vector<8x1xf32>
    %24 = arith.maximumf %23, %13 : vector<8x1xf32>
    %25 = vector.broadcast %cst_10 : f32 to vector<8x1xf32>
    %26 = arith.minimumf %25, %24 : vector<8x1xf32>
    %cst_11 = arith.constant 1.600000e+01 : f32
    %27 = vector.broadcast %cst_11 : f32 to vector<8x1xf32>
    %28 = arith.mulf %26, %27 : vector<8x1xf32>
    %29 = arith.addf %28, %22 : vector<8x1xf32>
    %30 = arith.fptosi %29 : vector<8x1xf32> to vector<8x1xi32>
    %31 = vector.broadcast %8 : vector<1x256xi32> to vector<8x256xi32>
    %32 = vector.broadcast %30 : vector<8x1xi32> to vector<8x256xi32>
    %33 = arith.cmpi eq, %31, %32 : vector<8x256xi32>
    %cst_12 = arith.constant 0.000000e+00 : f32
    %34 = vector.shape_cast %18 : vector<8x1xf32> to vector<8x1xf32>
    %35 = vector.broadcast %34 : vector<8x1xf32> to vector<8x256xf32>
    %36 = vector.broadcast %cst_12 : f32 to vector<8x256xf32>
    %37 = arith.select %33, %35, %36 : vector<8x256xi1>, vector<8x256xf32>
    %38 = arith.addf %9, %37 : vector<8x256xf32>
    %cst_13 = arith.constant 1.000000e+00 : f32
    %39 = vector.broadcast %cst_13 : f32 to vector<8x1xf32>
    %40 = arith.addf %4, %39 : vector<8x1xf32>
    %cst_14 = arith.constant 0.000000e+00 : f32
    %41 = vector.broadcast %cst_14 : f32 to vector<8x1xf32>
    %42 = arith.addf %5, %41 : vector<8x1xf32>
    %cst_15 = arith.constant 1.000000e+00 : f32
    %43 = vector.broadcast %cst_15 : f32 to vector<8x1xf32>
    %44 = arith.subf %43, %7 : vector<8x1xf32>
    %45 = arith.mulf %6, %44 : vector<8x1xf32>
    %cst_16 = arith.constant 0.000000e+00 : f32
    %cst_17 = arith.constant 1.500000e+01 : f32
    %46 = vector.broadcast %cst_16 : f32 to vector<8x1xf32>
    %47 = arith.maximumf %46, %40 : vector<8x1xf32>
    %48 = vector.broadcast %cst_17 : f32 to vector<8x1xf32>
    %49 = arith.minimumf %48, %47 : vector<8x1xf32>
    %cst_18 = arith.constant 0.000000e+00 : f32
    %cst_19 = arith.constant 1.500000e+01 : f32
    %50 = vector.broadcast %cst_18 : f32 to vector<8x1xf32>
    %51 = arith.maximumf %50, %42 : vector<8x1xf32>
    %52 = vector.broadcast %cst_19 : f32 to vector<8x1xf32>
    %53 = arith.minimumf %52, %51 : vector<8x1xf32>
    %cst_20 = arith.constant 1.600000e+01 : f32
    %54 = vector.broadcast %cst_20 : f32 to vector<8x1xf32>
    %55 = arith.mulf %53, %54 : vector<8x1xf32>
    %56 = arith.addf %55, %49 : vector<8x1xf32>
    %57 = arith.fptosi %56 : vector<8x1xf32> to vector<8x1xi32>
    %58 = vector.broadcast %8 : vector<1x256xi32> to vector<8x256xi32>
    %59 = vector.broadcast %57 : vector<8x1xi32> to vector<8x256xi32>
    %60 = arith.cmpi eq, %58, %59 : vector<8x256xi32>
    %cst_21 = arith.constant 0.000000e+00 : f32
    %61 = vector.shape_cast %45 : vector<8x1xf32> to vector<8x1xf32>
    %62 = vector.broadcast %61 : vector<8x1xf32> to vector<8x256xf32>
    %63 = vector.broadcast %cst_21 : f32 to vector<8x256xf32>
    %64 = arith.select %60, %62, %63 : vector<8x256xi1>, vector<8x256xf32>
    %65 = arith.addf %38, %64 : vector<8x256xf32>
    %cst_22 = arith.constant 0.000000e+00 : f32
    %66 = vector.broadcast %cst_22 : f32 to vector<8x1xf32>
    %67 = arith.addf %4, %66 : vector<8x1xf32>
    %cst_23 = arith.constant 1.000000e+00 : f32
    %68 = vector.broadcast %cst_23 : f32 to vector<8x1xf32>
    %69 = arith.addf %5, %68 : vector<8x1xf32>
    %cst_24 = arith.constant 1.000000e+00 : f32
    %70 = vector.broadcast %cst_24 : f32 to vector<8x1xf32>
    %71 = arith.subf %70, %6 : vector<8x1xf32>
    %72 = arith.mulf %71, %7 : vector<8x1xf32>
    %cst_25 = arith.constant 0.000000e+00 : f32
    %cst_26 = arith.constant 1.500000e+01 : f32
    %73 = vector.broadcast %cst_25 : f32 to vector<8x1xf32>
    %74 = arith.maximumf %73, %67 : vector<8x1xf32>
    %75 = vector.broadcast %cst_26 : f32 to vector<8x1xf32>
    %76 = arith.minimumf %75, %74 : vector<8x1xf32>
    %cst_27 = arith.constant 0.000000e+00 : f32
    %cst_28 = arith.constant 1.500000e+01 : f32
    %77 = vector.broadcast %cst_27 : f32 to vector<8x1xf32>
    %78 = arith.maximumf %77, %69 : vector<8x1xf32>
    %79 = vector.broadcast %cst_28 : f32 to vector<8x1xf32>
    %80 = arith.minimumf %79, %78 : vector<8x1xf32>
    %cst_29 = arith.constant 1.600000e+01 : f32
    %81 = vector.broadcast %cst_29 : f32 to vector<8x1xf32>
    %82 = arith.mulf %80, %81 : vector<8x1xf32>
    %83 = arith.addf %82, %76 : vector<8x1xf32>
    %84 = arith.fptosi %83 : vector<8x1xf32> to vector<8x1xi32>
    %85 = vector.broadcast %8 : vector<1x256xi32> to vector<8x256xi32>
    %86 = vector.broadcast %84 : vector<8x1xi32> to vector<8x256xi32>
    %87 = arith.cmpi eq, %85, %86 : vector<8x256xi32>
    %cst_30 = arith.constant 0.000000e+00 : f32
    %88 = vector.shape_cast %72 : vector<8x1xf32> to vector<8x1xf32>
    %89 = vector.broadcast %88 : vector<8x1xf32> to vector<8x256xf32>
    %90 = vector.broadcast %cst_30 : f32 to vector<8x256xf32>
    %91 = arith.select %87, %89, %90 : vector<8x256xi1>, vector<8x256xf32>
    %92 = arith.addf %65, %91 : vector<8x256xf32>
    %cst_31 = arith.constant 1.000000e+00 : f32
    %93 = vector.broadcast %cst_31 : f32 to vector<8x1xf32>
    %94 = arith.addf %4, %93 : vector<8x1xf32>
    %cst_32 = arith.constant 1.000000e+00 : f32
    %95 = vector.broadcast %cst_32 : f32 to vector<8x1xf32>
    %96 = arith.addf %5, %95 : vector<8x1xf32>
    %97 = arith.mulf %6, %7 : vector<8x1xf32>
    %cst_33 = arith.constant 0.000000e+00 : f32
    %cst_34 = arith.constant 1.500000e+01 : f32
    %98 = vector.broadcast %cst_33 : f32 to vector<8x1xf32>
    %99 = arith.maximumf %98, %94 : vector<8x1xf32>
    %100 = vector.broadcast %cst_34 : f32 to vector<8x1xf32>
    %101 = arith.minimumf %100, %99 : vector<8x1xf32>
    %cst_35 = arith.constant 0.000000e+00 : f32
    %cst_36 = arith.constant 1.500000e+01 : f32
    %102 = vector.broadcast %cst_35 : f32 to vector<8x1xf32>
    %103 = arith.maximumf %102, %96 : vector<8x1xf32>
    %104 = vector.broadcast %cst_36 : f32 to vector<8x1xf32>
    %105 = arith.minimumf %104, %103 : vector<8x1xf32>
    %cst_37 = arith.constant 1.600000e+01 : f32
    %106 = vector.broadcast %cst_37 : f32 to vector<8x1xf32>
    %107 = arith.mulf %105, %106 : vector<8x1xf32>
    %108 = arith.addf %107, %101 : vector<8x1xf32>
    %109 = arith.fptosi %108 : vector<8x1xf32> to vector<8x1xi32>
    %110 = vector.broadcast %8 : vector<1x256xi32> to vector<8x256xi32>
    %111 = vector.broadcast %109 : vector<8x1xi32> to vector<8x256xi32>
    %112 = arith.cmpi eq, %110, %111 : vector<8x256xi32>
    %cst_38 = arith.constant 0.000000e+00 : f32
    %113 = vector.shape_cast %97 : vector<8x1xf32> to vector<8x1xf32>
    %114 = vector.broadcast %113 : vector<8x1xf32> to vector<8x256xf32>
    %115 = vector.broadcast %cst_38 : f32 to vector<8x256xf32>
    %116 = arith.select %112, %114, %115 : vector<8x256xi1>, vector<8x256xf32>
    %117 = arith.addf %92, %116 : vector<8x256xf32>
    %118 = arith.truncf %117 : vector<8x256xf32> to vector<8x256xbf16>
    %cst_39 = arith.constant dense<0.000000e+00> : vector<8x128xf32>
    %119 = tpu.matmul %118, %1, %cst_39 {dimension_numbers = #tpu.dot_dimension_numbers<[1], [0], [0], [1], [0, 0, 1, 1], [], []>} : vector<8x256xbf16>, vector<256x128xbf16>, vector<8x128xf32> -> vector<8x128xf32>
    %c0_40 = arith.constant 0 : index
    %c0_41 = arith.constant 0 : index
    %120 = vector.load %arg3[%c0_40, %c0_41] : memref<8x128xf32, #tpu.memory_space<vmem>>, vector<8x128xf32>
    tpu.vector_store %arg3[%c0_40, %c0_41], %119 {strides = array<i32>} : memref<8x128xf32, #tpu.memory_space<vmem>>, vector<8x128xf32>,
    return
  }
  func.func @transform_0(%arg0: i32) -> (i32, i32) {
    %c0_i32 = arith.constant 0 : i32
    %c0_i32_0 = arith.constant 0 : i32
    return %arg0, %c0_i32 : i32, i32
  }
  func.func @transform_1(%arg0: i32) -> (i32, i32) {
    %c0_i32 = arith.constant 0 : i32
    %c0_i32_0 = arith.constant 0 : i32
    %c0_i32_1 = arith.constant 0 : i32
    return %c0_i32, %c0_i32_0 : i32, i32
  }
  func.func @transform_2(%arg0: i32) -> (i32, i32) {
    %c0_i32 = arith.constant 0 : i32
    %c0_i32_0 = arith.constant 0 : i32
    return %arg0, %c0_i32 : i32, i32
  }
}

</mosaic_0001>

<llo_original>
// kernel: tpu_custom_call.1
$region0: #{tpu_custom_call.1}
  #allocation0 [shape = 'u32[]', space=smem, size = 0x4, offset = 0x4, fixed_abs, tag = 'smem constant byte address 0x4 - core index']
  #allocation1 [shape = 'u32[144,128]{1,0:T(1,128)}', space=vmem, size = 0x12000, scoped, tag = 'internal scratch']
  %s0 = inlined_call_operand.vmem [shape: f32[8,2], index: 0, kind: input, shape index: {}]
  %s1 = inlined_call_operand.hbm [shape: bf16[256,128], index: 1, kind: input, shape index: {}]
  %s2 = inlined_call_operand.hbm [shape: f32[8,128], index: 2, kind: output, shape index: {}]
  %s3 = sld [smem:[#allocation0]]
  $region22: #{tpu_custom_call.1} parent=0
    _
  %s5 = ssub.s32 1, %s3
  %s6 = scalar_select 0, %s5, %s3
  $region1: #{tpu_custom_call.1} parent=0
    #allocation2 [shape = 'u8[65536]{0}', space=vmem, size = 0x10000, scoped, tag = 'input window, operand 1, single buffered']
    #allocation3 [shape = 's32[1]{0}', space=sflag, size = 0x4, scoped, tag = 'scoped memory for tpu_custom_call.1']
    #allocation4 [shape = 's32[1]{0}', space=sflag, size = 0x4, scoped, tag = 'scoped memory for tpu_custom_call.1']
    #allocation5 [shape = 'u8[4096]{0}', space=vmem, size = 0x1000, scoped, tag = 'output window, operand 0, single buffered']
    %7 = vsyncpa [#allocation3], 0
    %8 = vsyncpa [#allocation4], 0
    // Predicated region
    $region2: #{tpu_custom_call.1} parent=1 // pred_check
      _
    $region3: #{tpu_custom_call.1} parent=1 // pred_check_branch
      %10 = sbr.rel (0) target = $region5
    $region4: #{tpu_custom_call.1} parent=1 // pred_region
      _
    $region5: #{tpu_custom_call.1} parent=1 // pred_fallthru
      _
    // Predicated region
    $region6: #{tpu_custom_call.1} parent=1 // pred_check
      _
    $region7: #{tpu_custom_call.1} parent=1 // pred_check_branch
      %12 = sbr.rel (0) target = $region9
    $region8: #{tpu_custom_call.1} parent=1 // pred_region
      %s14 = ssub.s32 2048, 2048
      %15 = vsyncadd [#allocation3], %s14
      %s16 = sshll.u32 [#allocation2], 4
      %s17 = int_to_ptr.vmem [resolvable:$true] %s16
      %22 = dma.hbm_to_vmem [thread:$0]  %s1, 2048, %s17, [#allocation3], 64, 64, 4
    $region9: #{tpu_custom_call.1} parent=1 // pred_fallthru
      _
    // Predicated region
    $region10: #{tpu_custom_call.1} parent=1 // pred_check
      _
    $region11: #{tpu_custom_call.1} parent=1 // pred_check_branch
      %24 = sbr.rel (0) target = $region13
    $region12: #{tpu_custom_call.1} parent=1 // pred_region
      %25 = dma.done [#allocation3], 2048
    $region13: #{tpu_custom_call.1} parent=1 // pred_fallthru
      _
    %v27 = vld [vmem:[%s0] sm:$0xff]
    %v28 = vld [vmem:[#allocation2] sm:$0xf]
    %v29 = vld [vmem:[#allocation2 + $0x4] sm:$0xf]
    %v30 = vld [vmem:[#allocation2 + $0x8] sm:$0xf]
    %v31 = vld [vmem:[#allocation2 + $0xc] sm:$0xf]
    %v32 = vld [vmem:[#allocation2 + $0x10] sm:$0xf]
    %v33 = vld [vmem:[#allocation2 + $0x14] sm:$0xf]
    %v34 = vld [vmem:[#allocation2 + $0x18] sm:$0xf]
    %v35 = vld [vmem:[#allocation2 + $0x1c] sm:$0xf]
    %v36 = vld [vmem:[#allocation2 + $0x20] sm:$0xf]
    %v37 = vld [vmem:[#allocation2 + $0x24] sm:$0xf]
    %v38 = vld [vmem:[#allocation2 + $0x28] sm:$0xf]
    %v39 = vld [vmem:[#allocation2 + $0x2c] sm:$0xf]
    %v40 = vld [vmem:[#allocation2 + $0x30] sm:$0xf]
    %v41 = vld [vmem:[#allocation2 + $0x34] sm:$0xf]
    %v42 = vld [vmem:[#allocation2 + $0x38] sm:$0xf]
    %v43 = vld [vmem:[#allocation2 + $0x3c] sm:$0xf]
    %v44 = vld [vmem:[#allocation2 + $0x40] sm:$0xf]
    %v45 = vld [vmem:[#allocation2 + $0x44] sm:$0xf]
    %v46 = vld [vmem:[#allocation2 + $0x48] sm:$0xf]
    %v47 = vld [vmem:[#allocation2 + $0x4c] sm:$0xf]
    %v48 = vld [vmem:[#allocation2 + $0x50] sm:$0xf]
    %v49 = vld [vmem:[#allocation2 + $0x54] sm:$0xf]
    %v50 = vld [vmem:[#allocation2 + $0x58] sm:$0xf]
    %v51 = vld [vmem:[#allocation2 + $0x5c] sm:$0xf]
    %v52 = vld [vmem:[#allocation2 + $0x60] sm:$0xf]
    %v53 = vld [vmem:[#allocation2 + $0x64] sm:$0xf]
    %v54 = vld [vmem:[#allocation2 + $0x68] sm:$0xf]
    %v55 = vld [vmem:[#allocation2 + $0x6c] sm:$0xf]
    %v56 = vld [vmem:[#allocation2 + $0x70] sm:$0xf]
    %v57 = vld [vmem:[#allocation2 + $0x74] sm:$0xf]
    %v58 = vld [vmem:[#allocation2 + $0x78] sm:$0xf]
    %v59 = vld [vmem:[#allocation2 + $0x7c] sm:$0xf]
    %v60 = vfloor.f32 %v27
    %v61 = vsub.f32 %v27, %v60
    %v62 = vlaneseq
    %v63 = vand.u32 %v62, 127
    %v64 = vadd.s32 %v63, 128
    %v65 = vadd.f32 %v60, 0.0
    %v66 = vsub.f32 1.0, %v61
    %68 = vrot.lane.b32.xlu0 %v66, 127
    %v69 = vpop.permute.xlu0 %68
    %v71 = vmul.f32 %v66, %v69
    %v72 = vmax.f32 %v65, 0.0
    %v73 = vmin.f32 %v72, 15.0
    %v74 = vmul.f32 %v73, 16.0
    %76 = vrot.lane.b32.xlu0 %v73, 1
    %v77 = vpop.permute.xlu0 %76
    %v79 = vadd.f32 %v74, %v77
    %v80 = vcvt.f32.s32.to.zero.pseudo %v79
    %81 = vset.pattern.permute.xlu0 1
    %82 = vperm.xlu0 %81, %v80
    %v83 = vpop.permute.xlu0 %82
    %vm84 = vcmp.eq.s32.totalorder %v63, %v83
    %vm85 = vcmp.eq.s32.totalorder %v64, %v83
    %87 = vset.pattern.permute.xlu0 0
    %88 = vperm.xlu0 %87, %v71
    %v89 = vpop.permute.xlu0 %88
    %v91 = vsel %vm84, %v89, 0.0
    %v92 = vsel %vm85, %v89, 0.0
    %v93 = vadd.f32 %v91, 0.0
    %v94 = vadd.f32 %v92, 0.0
    %v95 = vadd.f32 %v60, 1.0
    %v96 = vmul.f32 %v61, %v69
    %v97 = vmax.f32 %v95, 0.0
    %v98 = vmin.f32 %v97, 15.0
    %100 = vrot.lane.b32.xlu0 %v98, 1
    %v101 = vpop.permute.xlu0 %100
    %v103 = vadd.f32 %v74, %v101
    %v104 = vcvt.f32.s32.to.zero.pseudo %v103
    %105 = vset.pattern.permute.xlu0 1
    %106 = vperm.xlu0 %105, %v104
    %v107 = vpop.permute.xlu0 %106
    %vm108 = vcmp.eq.s32.totalorder %v63, %v107
    %vm109 = vcmp.eq.s32.totalorder %v64, %v107
    %111 = vset.pattern.permute.xlu0 0
    %112 = vperm.xlu0 %111, %v96
    %v113 = vpop.permute.xlu0 %112
    %v115 = vsel %vm108, %v113, 0.0
    %v116 = vsel %vm109, %v113, 0.0
    %v117 = vadd.f32 %v93, %v115
    %v118 = vadd.f32 %v94, %v116
    %120 = vrot.lane.b32.xlu0 %v61, 127
    %v121 = vpop.permute.xlu0 %120
    %v123 = vmul.f32 %v66, %v121
    %v124 = vmul.f32 %v98, 16.0
    %v125 = vadd.f32 %v124, %v77
    %v126 = vcvt.f32.s32.to.zero.pseudo %v125
    %127 = vset.pattern.permute.xlu0 1
    %128 = vperm.xlu0 %127, %v126
    %v129 = vpop.permute.xlu0 %128
    %vm130 = vcmp.eq.s32.totalorder %v63, %v129
    %vm131 = vcmp.eq.s32.totalorder %v64, %v129
    %133 = vset.pattern.permute.xlu0 0
    %134 = vperm.xlu0 %133, %v123
    %v135 = vpop.permute.xlu0 %134
    %v137 = vsel %vm130, %v135, 0.0
    %v138 = vsel %vm131, %v135, 0.0
    %v139 = vadd.f32 %v117, %v137
    %v140 = vadd.f32 %v118, %v138
    %v141 = vmul.f32 %v61, %v121
    %v142 = vadd.f32 %v124, %v101
    %v143 = vcvt.f32.s32.to.zero.pseudo %v142
    %144 = vset.pattern.permute.xlu0 1
    %145 = vperm.xlu0 %144, %v143
    %v146 = vpop.permute.xlu0 %145
    %vm147 = vcmp.eq.s32.totalorder %v63, %v146
    %vm148 = vcmp.eq.s32.totalorder %v64, %v146
    %150 = vset.pattern.permute.xlu0 0
    %151 = vperm.xlu0 %150, %v141
    %v152 = vpop.permute.xlu0 %151
    %v154 = vsel %vm147, %v152, 0.0
    %v155 = vsel %vm148, %v152, 0.0
    %v156 = vadd.f32 %v139, %v154
    %v157 = vadd.f32 %v140, %v155
    %v158 = vpack.c.bf16 %v156, %v156
    %v159 = vpack.c.bf16 %v157, %v157
    %v192 = vunpack.c.l.b16 %v28
    %v193 = vunpack.c.l.b16 %v29
    %v194 = vunpack.c.l.b16 %v30
    %v195 = vunpack.c.l.b16 %v31
    %v196 = vunpack.c.l.b16 %v32
    %v197 = vunpack.c.l.b16 %v33
    %v198 = vunpack.c.l.b16 %v34
    %v199 = vunpack.c.l.b16 %v35
    %v200 = vunpack.c.l.b16 %v36
    %v201 = vunpack.c.l.b16 %v37
    %v202 = vunpack.c.l.b16 %v38
    %v203 = vunpack.c.l.b16 %v39
    %v204 = vunpack.c.l.b16 %v40
    %v205 = vunpack.c.l.b16 %v41
    %v206 = vunpack.c.l.b16 %v42
    %v207 = vunpack.c.l.b16 %v43
    %v208 = vunpack.c.l.b16 %v44
    %v209 = vunpack.c.l.b16 %v45
    %v210 = vunpack.c.l.b16 %v46
    %v211 = vunpack.c.l.b16 %v47
    %v212 = vunpack.c.l.b16 %v48
    %v213 = vunpack.c.l.b16 %v49
    %v214 = vunpack.c.l.b16 %v50
    %v215 = vunpack.c.l.b16 %v51
    %v216 = vunpack.c.l.b16 %v52
    %v217 = vunpack.c.l.b16 %v53
    %v218 = vunpack.c.l.b16 %v54
    %v219 = vunpack.c.l.b16 %v55
    %v220 = vunpack.c.l.b16 %v56
    %v221 = vunpack.c.l.b16 %v57
    %v222 = vunpack.c.l.b16 %v58
    %v223 = vunpack.c.l.b16 %v59
    %v224 = vpack.c.b16 %v193, %v192
    %v225 = vpack.c.b16 %v195, %v194
    %v226 = vpack.c.b16 %v197, %v196
    %v227 = vpack.c.b16 %v199, %v198
    %v228 = vpack.c.b16 %v201, %v200
    %v229 = vpack.c.b16 %v203, %v202
    %v230 = vpack.c.b16 %v205, %v204
    %v231 = vpack.c.b16 %v207, %v206
    %v232 = vpack.c.b16 %v209, %v208
    %v233 = vpack.c.b16 %v211, %v210
    %v234 = vpack.c.b16 %v213, %v212
    %v235 = vpack.c.b16 %v215, %v214
    %v236 = vpack.c.b16 %v217, %v216
    %v237 = vpack.c.b16 %v219, %v218
    %v238 = vpack.c.b16 %v221, %v220
    %v239 = vpack.c.b16 %v223, %v222
    %256 = vmatprep.subr.bf16.mxu0 0
    %257 = vmatpush1.bf16.msra.mxu0 %v224
    %258 = vmatprep.subr.bf16.mxu0 0
    %259 = vmatpush1.bf16.msra.mxu0 %v225
    %260 = vmatprep.subr.bf16.mxu0 0
    %261 = vmatpush1.bf16.msra.mxu0 %v226
    %262 = vmatprep.subr.bf16.mxu0 0
    %263 = vmatpush1.bf16.msra.mxu0 %v227
    %264 = vmatprep.subr.bf16.mxu0 0
    %265 = vmatpush1.bf16.msra.mxu0 %v228
    %266 = vmatprep.subr.bf16.mxu0 0
    %267 = vmatpush1.bf16.msra.mxu0 %v229
    %268 = vmatprep.subr.bf16.mxu0 0
    %269 = vmatpush1.bf16.msra.mxu0 %v230
    %270 = vmatprep.subr.bf16.mxu0 0
    %271 = vmatpush1.bf16.msra.mxu0 %v231
    %272 = vmatprep.subr.bf16.mxu0 0
    %273 = vmatpush1.bf16.msra.mxu0 %v232
    %274 = vmatprep.subr.bf16.mxu0 0
    %275 = vmatpush1.bf16.msra.mxu0 %v233
    %276 = vmatprep.subr.bf16.mxu0 0
    %277 = vmatpush1.bf16.msra.mxu0 %v234
    %278 = vmatprep.subr.bf16.mxu0 0
    %279 = vmatpush1.bf16.msra.mxu0 %v235
    %280 = vmatprep.subr.bf16.mxu0 0
    %281 = vmatpush1.bf16.msra.mxu0 %v236
    %282 = vmatprep.subr.bf16.mxu0 0
    %283 = vmatpush1.bf16.msra.mxu0 %v237
    %284 = vmatprep.subr.bf16.mxu0 0
    %285 = vmatpush1.bf16.msra.mxu0 %v238
    %286 = vmatprep.subr.bf16.mxu0 0
    %287 = vmatpush1.bf16.msra.mxu0 %v239
    %288 = vmatprep.mubr.bf16.mxu0 %v159
    %289 = vmatmul.mubr.bf16.gmra.mrb[0].mxu0 %v158
    %v290 = vpop.f32.mrb[0].mxu0
    %v291 = vadd.f32 0.0, %v290
    %v292 = vpop.f32.mrb[0].mxu0
    %v293 = vpop.f32.mrb[0].mxu0
    %v294 = vpop.f32.mrb[0].mxu0
    %295 = vdwg.mxu0
    %296 = vst [vmem:[#allocation5] sm:$0xff] %v291
    // Predicated region
    $region14: #{tpu_custom_call.1} parent=1 // pred_check
      _
    $region15: #{tpu_custom_call.1} parent=1 // pred_check_branch
      %298 = sbr.rel (0) target = $region17
    $region16: #{tpu_custom_call.1} parent=1 // pred_region
      %s300 = ssub.s32 128, 128
      %301 = vsyncadd [#allocation4], %s300
      %s303 = sshll.u32 [#allocation5], 4
      %s304 = int_to_ptr.vmem [resolvable:$true] %s303
      %306 = dma.vmem_to_hbm [thread:$0]  %s304, 128, %s2, [#allocation4]
    $region17: #{tpu_custom_call.1} parent=1 // pred_fallthru
      _
    // Predicated region
    $region18: #{tpu_custom_call.1} parent=1 // pred_check
      _
    $region19: #{tpu_custom_call.1} parent=1 // pred_check_branch
      %308 = sbr.rel (0) target = $region21
    $region20: #{tpu_custom_call.1} parent=1 // pred_region
      %309 = dma.done [#allocation4], 128
    $region21: #{tpu_custom_call.1} parent=1 // pred_fallthru
      _
    %310 = vsyncpa [#allocation3], 1
    %311 = vsyncpa [#allocation4], 1

</llo_original>
